<compile_context>
chip_gen: v5e
topology: v5e:2x2
jax: 0.10.0
libtpu: 0.0.40
codegen_flags: <defaults>
</compile_context>

<pallas_src>
import jax
import jax.numpy as jnp
from jax.experimental import pallas as pl
from jax.experimental.pallas import tpu as pltpu


def _round_up(x, m):
    return ((x + m - 1) // m) * m


def _lora_conv2d_kernel(p_ref, w_ref, bias_ref, o_ref):
    # p_ref:    (TM, Kp)      im2col patch tile (compute dtype, e.g. bf16)
    # w_ref:    (Kp, Coutp)   merged weight W_eff = W_base + scaling * W_B @ W_A
    # bias_ref: (1, Coutp)    base conv bias (f32)
    # o_ref:    (TM, Coutp)
    acc = jnp.dot(p_ref[...], w_ref[...], preferred_element_type=jnp.float32)
    o_ref[...] = (acc + bias_ref[...]).astype(o_ref.dtype)


def _im2col_nhwc(x_nchw, kh, kw, stride, padding):
    """Extract conv patches, channels-minor.

    Returns ([N*Hout*Wout, kh*kw*Cin], Hout, Wout); flat K ordering is (kh, kw, Cin).
    """
    n, c, h, w = x_nchw.shape
    x = jnp.transpose(x_nchw, (0, 2, 3, 1))                      # NHWC, once
    xp = jnp.pad(x, ((0, 0), (padding, padding), (padding, padding), (0, 0)))
    hout = (h + 2 * padding - kh) // stride + 1
    wout = (w + 2 * padding - kw) // stride + 1
    cols = []
    for i in range(kh):
        for j in range(kw):
            cols.append(
                xp[:, i : i + stride * hout : stride, j : j + stride * wout : stride, :]
            )
    patches = jnp.stack(cols, axis=3)                            # [N,Hout,Wout,kh*kw,C]
    patches = patches.reshape(n * hout * wout, kh * kw * c)
    return patches, hout, wout


def lora_conv2d_forward(
    x, w_base, b_base, w_a, w_b, *, stride, padding, scaling,
    tm=512, compute_dtype=jnp.bfloat16, output_layout="NCHW",
):
    """Fused LoraConv2d forward.

    x: [N, Cin, H, W] (NCHW); w_base: [Cout, Cin, kh, kw]; b_base: [Cout];
    w_a: [r, Cin, kh, kw]; w_b: [Cout, r, 1, 1].
    Returns NCHW output (or NHWC if output_layout == "NHWC").
    """
    n, cin, h, w = x.shape
    cout, _, kh, kw = w_base.shape
    r = w_a.shape[0]
    out_dtype = x.dtype

    # ---- host-side weight prep: exact merge of LoRA into the base weight ---------
    # delta[o,i,kh,kw] = sum_r W_B[o,r] * W_A[r,i,kh,kw]   (matches get_delta_weight)
    wb2 = w_b.reshape(cout, r).astype(jnp.float32)
    wa2 = w_a.astype(jnp.float32).reshape(r, cin * kh * kw)
    w_eff = w_base.astype(jnp.float32) + scaling * (wb2 @ wa2).reshape(cout, cin, kh, kw)
    # Flatten to [K, Cout] with K ordering (kh, kw, Cin), matching NHWC im2col.
    w_mat = jnp.transpose(w_eff, (2, 3, 1, 0)).reshape(kh * kw * cin, cout)

    # ---- im2col (NHWC, channels-minor) --------------------------------------------
    # TODO(synk): fuse patch extraction into the kernel (x kept in HBM via
    #             memory_space=pl.ANY + manual make_async_copy of row strips) to avoid
    #             materializing the kh*kw-fold inflated patch matrix in HBM.
    patches, hout, wout = _im2col_nhwc(x, kh, kw, stride, padding)
    m, k = patches.shape

    # ---- lane-dense padding & tile sizing -------------------------------------------
    k_pad = _round_up(k, 128)
    cout_pad = _round_up(cout, 128)
    in_bytes = jnp.dtype(compute_dtype).itemsize
    out_bytes = jnp.dtype(out_dtype).itemsize

    tm = min(tm, max(128, _round_up(m, 128)))      # don't over-pad tiny inputs

    def vmem_estimate(t):
        return (2 * t * k_pad * in_bytes               # double-buffered patch tiles
                + 2 * t * cout_pad * out_bytes         # double-buffered output tiles
                + 2 * k_pad * cout_pad * in_bytes      # resident merged weight (2 bufs)
                + 2 * cout_pad * 4)                    # resident bias

    vmem_cap = 48 * 1024 * 1024   # conservative vs v7x's 64 MiB per-TC VMEM
    while tm > 128 and vmem_estimate(tm) > vmem_cap:
        tm //= 2
    vmem_limit = int(min(max(vmem_estimate(tm) * 3 // 2, 32 * 1024 * 1024),
                         64 * 1024 * 1024))

    m_pad = _round_up(m, tm)
    patches_p = jnp.pad(patches, ((0, m_pad - m), (0, k_pad - k))).astype(compute_dtype)
    w_p = jnp.pad(w_mat, ((0, k_pad - k), (0, cout_pad - cout))).astype(compute_dtype)
    bias_p = jnp.pad(b_base.astype(jnp.float32), (0, cout_pad - cout)).reshape(1, cout_pad)

    # ---- fused GEMM kernel ------------------------------------------------------------
    out = pl.pallas_call(
        _lora_conv2d_kernel,
        out_shape=jax.ShapeDtypeStruct((m_pad, cout_pad), out_dtype),
        grid_spec=pltpu.PrefetchScalarGridSpec(
            num_scalar_prefetch=0,
            grid=(m_pad // tm,),
            in_specs=[
                pl.BlockSpec((tm, k_pad), lambda i: (i, 0)),        # streamed patches
                pl.BlockSpec((k_pad, cout_pad), lambda i: (0, 0)),  # resident merged weight
                pl.BlockSpec((1, cout_pad), lambda i: (0, 0)),      # resident bias
            ],
            out_specs=pl.BlockSpec((tm, cout_pad), lambda i: (i, 0)),
        ),
        compiler_params=pltpu.CompilerParams(
            dimension_semantics=("parallel",),   # M axis shards across v7x's 2 TCs
            vmem_limit_bytes=vmem_limit,
        ),
    )(patches_p, w_p, bias_p)

    out = out[:m, :cout].reshape(n, hout, wout, cout)               # NHWC
    if output_layout == "NHWC":
        return out
    return jnp.transpose(out, (0, 3, 1, 2))                         # back to NCHW


def _reference_forward(x, w_base, b_base, w_a, w_b, *, stride, padding, scaling):
    dn = ("NCHW", "OIHW", "NCHW")
    pad = [(padding, padding), (padding, padding)]
    base = jax.lax.conv_general_dilated(x, w_base, (stride, stride), pad, dimension_numbers=dn)
    base = base + b_base.reshape(1, -1, 1, 1)
    a = jax.lax.conv_general_dilated(x, w_a, (stride, stride), pad, dimension_numbers=dn)
    b = jax.lax.conv_general_dilated(a, w_b, (1, 1), [(0, 0), (0, 0)], dimension_numbers=dn)
    return base + scaling * b


if __name__ == "__main__":
    # Small shapes consistent with LoraConv2d over a Conv2d(4, 8, 3, stride=1, padding=1).
    N, Cin, H, W = 2, 4, 16, 16
    Cout, KH, KW = 8, 3, 3
    stride, padding = 1, 1
    rank, alpha = 4, 8
    scaling = alpha / rank  # use_rslora=False

    key = jax.random.PRNGKey(0)
    kx, kw_, kb, ka, kbb = jax.random.split(key, 5)
    x = jax.random.normal(kx, (N, Cin, H, W), jnp.float32)
    w_base = jax.random.normal(kw_, (Cout, Cin, KH, KW), jnp.float32) * 0.1
    b_base = jax.random.normal(kb, (Cout,), jnp.float32) * 0.1
    w_a = jax.random.normal(ka, (rank, Cin, KH, KW), jnp.float32) * 0.1
    # NOTE: faithful 'default' init zeroes lora_B (LoRA branch becomes a no-op); use a
    # nonzero deterministic init so the merged-weight path is actually exercised.
    w_b = jax.random.normal(kbb, (Cout, rank, 1, 1), jnp.float32) * 0.1
    # TODO(synk): lora_dropout > 0 (nn.Dropout) not implemented; default p=0.0 is Identity.

    out = lora_conv2d_forward(
        x, w_base, b_base, w_a, w_b, stride=stride, padding=padding, scaling=scaling
    )
    out = jax.block_until_ready(out)

    ref = _reference_forward(
        x, w_base, b_base, w_a, w_b, stride=stride, padding=padding, scaling=scaling
    )
    assert out.shape == (N, Cout, H, W)
    # bf16 inputs inside the kernel (f32 accumulate) -> relaxed tolerance vs f32 reference.
    assert jnp.allclose(out, ref, atol=2e-2, rtol=2e-2), float(jnp.max(jnp.abs(out - ref)))
    print("KERNEL_OK")
</pallas_src>

<mosaic_0001>
module attributes {stable_mosaic.version = 11 : i64} {
  func.func @_lora_conv2d_kernel(%arg0: i32, %arg1: memref<512x128xbf16, #tpu.memory_space<vmem>>, %arg2: memref<128x128xbf16, #tpu.memory_space<vmem>>, %arg3: memref<1x128xf32, #tpu.memory_space<vmem>>, %arg4: memref<512x128xf32, #tpu.memory_space<vmem>>) attributes {dimension_semantics = [#tpu.dimension_semantics<parallel>], iteration_bounds = array<i64: 1>, scalar_prefetch = 0 : i64, scratch_operands = 0 : i64, tpu.core_type = #tpu.core_type<tc>, window_params = [{transform_indices = @transform_0, window_bounds = array<i64: 512, 128>}, {pipeline_mode = #tpu.pipeline_mode<synchronous>, transform_indices = @transform_1, window_bounds = array<i64: 128, 128>}, {pipeline_mode = #tpu.pipeline_mode<synchronous>, transform_indices = @transform_2, window_bounds = array<i64: 1, 128>}, {transform_indices = @transform_3, window_bounds = array<i64: 512, 128>}]} {
    %c0 = arith.constant 0 : index
    %c0_0 = arith.constant 0 : index
    %0 = vector.load %arg1[%c0, %c0_0] : memref<512x128xbf16, #tpu.memory_space<vmem>>, vector<512x128xbf16>
    %c0_1 = arith.constant 0 : index
    %c0_2 = arith.constant 0 : index
    %1 = vector.load %arg2[%c0_1, %c0_2] : memref<128x128xbf16, #tpu.memory_space<vmem>>, vector<128x128xbf16>
    %cst = arith.constant dense<0.000000e+00> : vector<512x128xf32>
    %2 = tpu.matmul %0, %1, %cst {dimension_numbers = #tpu.dot_dimension_numbers<[1], [0], [0], [1], [0, 0, 1, 1], [], []>} : vector<512x128xbf16>, vector<128x128xbf16>, vector<512x128xf32> -> vector<512x128xf32>
    %c0_3 = arith.constant 0 : index
    %c0_4 = arith.constant 0 : index
    %3 = vector.load %arg3[%c0_3, %c0_4] : memref<1x128xf32, #tpu.memory_space<vmem>>, vector<1x128xf32>
    %4 = vector.broadcast %3 : vector<1x128xf32> to vector<512x128xf32>
    %5 = arith.addf %2, %4 : vector<512x128xf32>
    %c0_5 = arith.constant 0 : index
    %c0_6 = arith.constant 0 : index
    %6 = vector.load %arg4[%c0_5, %c0_6] : memref<512x128xf32, #tpu.memory_space<vmem>>, vector<512x128xf32>
    tpu.vector_store %arg4[%c0_5, %c0_6], %5 {strides = array<i32>} : memref<512x128xf32, #tpu.memory_space<vmem>>, vector<512x128xf32>,
    return
  }
  func.func @transform_0(%arg0: i32) -> (i32, i32) {
    %c0_i32 = arith.constant 0 : i32
    %c0_i32_0 = arith.constant 0 : i32
    return %arg0, %c0_i32 : i32, i32
  }
  func.func @transform_1(%arg0: i32) -> (i32, i32) {
    %c0_i32 = arith.constant 0 : i32
    %c0_i32_0 = arith.constant 0 : i32
    %c0_i32_1 = arith.constant 0 : i32
    return %c0_i32, %c0_i32_0 : i32, i32
  }
  func.func @transform_2(%arg0: i32) -> (i32, i32) {
    %c0_i32 = arith.constant 0 : i32
    %c0_i32_0 = arith.constant 0 : i32
    %c0_i32_1 = arith.constant 0 : i32
    return %c0_i32, %c0_i32_0 : i32, i32
  }
  func.func @transform_3(%arg0: i32) -> (i32, i32) {
    %c0_i32 = arith.constant 0 : i32
    %c0_i32_0 = arith.constant 0 : i32
    return %arg0, %c0_i32 : i32, i32
  }
}

</mosaic_0001>

<llo_original>
// kernel: tpu_custom_call.1
$region0: #{tpu_custom_call.1}
  #allocation0 [shape = 'u32[]', space=smem, size = 0x4, offset = 0x4, fixed_abs, tag = 'smem constant byte address 0x4 - core index']
  #allocation1 [shape = 'u32[72,128]{1,0:T(1,128)}', space=vmem, size = 0x9000, scoped, tag = 'internal scratch']
  %s0 = inlined_call_operand.hbm [shape: bf16[512,128], index: 0, kind: input, shape index: {}]
  %s1 = inlined_call_operand.hbm [shape: bf16[128,128], index: 1, kind: input, shape index: {}]
  %s2 = inlined_call_operand.vmem [shape: f32[1,128], index: 2, kind: input, shape index: {}]
  %s3 = inlined_call_operand.hbm [shape: f32[512,128], index: 3, kind: output, shape index: {}]
  %s4 = sld [smem:[#allocation0]]
  $region30: #{tpu_custom_call.1} parent=0
    _
  %s6 = ssub.s32 1, %s4
  %s7 = scalar_select 0, %s6, %s4
  $region1: #{tpu_custom_call.1} parent=0
    #allocation2 [shape = 'u8[131072]{0}', space=vmem, size = 0x20000, scoped, tag = 'input window, operand 0, single buffered']
    #allocation3 [shape = 's32[1]{0}', space=sflag, size = 0x4, scoped, tag = 'scoped memory for tpu_custom_call.1']
    #allocation4 [shape = 's32[1]{0}', space=sflag, size = 0x4, scoped, tag = 'scoped memory for tpu_custom_call.1']
    #allocation5 [shape = 'u8[32768]{0}', space=vmem, size = 0x8000, scoped, tag = 'input window, operand 1, single buffered']
    #allocation6 [shape = 's32[1]{0}', space=sflag, size = 0x4, scoped, tag = 'scoped memory for tpu_custom_call.1']
    #allocation7 [shape = 'u8[262144]{0}', space=vmem, size = 0x40000, scoped, tag = 'output window, operand 0, single buffered']
    %8 = vsyncpa [#allocation3], 0
    %9 = vsyncpa [#allocation6], 0
    %10 = vsyncpa [#allocation4], 0
    // Predicated region
    $region2: #{tpu_custom_call.1} parent=1 // pred_check
      _
    $region3: #{tpu_custom_call.1} parent=1 // pred_check_branch
      %12 = sbr.rel (0) target = $region5
    $region4: #{tpu_custom_call.1} parent=1 // pred_region
      %14 = vsyncadd [#allocation3], 0
      %s15 = sshll.u32 %s0, 4
      %s16 = int_to_ptr.hbm [resolvable:$true] %s15
      %s17 = sshll.u32 [#allocation2], 4
      %s18 = int_to_ptr.vmem [resolvable:$true] %s17
      %23 = dma.hbm_to_vmem [thread:$0]  %s16, 4096, %s18, [#allocation3], 64, 64, 4
    $region5: #{tpu_custom_call.1} parent=1 // pred_fallthru
      _
    // Predicated region
    $region6: #{tpu_custom_call.1} parent=1 // pred_check
      _
    $region7: #{tpu_custom_call.1} parent=1 // pred_check_branch
      %25 = sbr.rel (0) target = $region9
    $region8: #{tpu_custom_call.1} parent=1 // pred_region
      %27 = vsyncadd [#allocation6], 0
      %s28 = sshll.u32 %s1, 4
      %s29 = int_to_ptr.hbm [resolvable:$true] %s28
      %s30 = sshll.u32 [#allocation5], 4
      %s31 = int_to_ptr.vmem [resolvable:$true] %s30
      %36 = dma.hbm_to_vmem [thread:$0]  %s29, 1024, %s31, [#allocation6], 64, 64, 4
    $region9: #{tpu_custom_call.1} parent=1 // pred_fallthru
      _
    // Predicated region
    $region10: #{tpu_custom_call.1} parent=1 // pred_check
      _
    $region11: #{tpu_custom_call.1} parent=1 // pred_check_branch
      %38 = sbr.rel (0) target = $region13
    $region12: #{tpu_custom_call.1} parent=1 // pred_region
      _
    $region13: #{tpu_custom_call.1} parent=1 // pred_fallthru
      _
    // Predicated region
    $region14: #{tpu_custom_call.1} parent=1 // pred_check
      _
    $region15: #{tpu_custom_call.1} parent=1 // pred_check_branch
      %40 = sbr.rel (0) target = $region17
    $region16: #{tpu_custom_call.1} parent=1 // pred_region
      %42 = dma.done [#allocation3], 4096
    $region17: #{tpu_custom_call.1} parent=1 // pred_fallthru
      _
    // Predicated region
    $region18: #{tpu_custom_call.1} parent=1 // pred_check
      _
    $region19: #{tpu_custom_call.1} parent=1 // pred_check_branch
      %44 = sbr.rel (0) target = $region21
    $region20: #{tpu_custom_call.1} parent=1 // pred_region
      %46 = dma.done [#allocation6], 1024
    $region21: #{tpu_custom_call.1} parent=1 // pred_fallthru
      _
    %v47 = vld [vmem:[#allocation2] sm:$0xf]
    %v48 = vld [vmem:[#allocation2 + $0x4] sm:$0xf]
    %v49 = vld [vmem:[#allocation2 + $0x8] sm:$0xf]
    %v50 = vld [vmem:[#allocation2 + $0xc] sm:$0xf]
    %v51 = vld [vmem:[#allocation2 + $0x10] sm:$0xf]
    %v52 = vld [vmem:[#allocation2 + $0x14] sm:$0xf]
    %v53 = vld [vmem:[#allocation2 + $0x18] sm:$0xf]
    %v54 = vld [vmem:[#allocation2 + $0x1c] sm:$0xf]
    %v55 = vld [vmem:[#allocation2 + $0x20] sm:$0xf]
    %v56 = vld [vmem:[#allocation2 + $0x24] sm:$0xf]
    %v57 = vld [vmem:[#allocation2 + $0x28] sm:$0xf]
    %v58 = vld [vmem:[#allocation2 + $0x2c] sm:$0xf]
    %v59 = vld [vmem:[#allocation2 + $0x30] sm:$0xf]
    %v60 = vld [vmem:[#allocation2 + $0x34] sm:$0xf]
    %v61 = vld [vmem:[#allocation2 + $0x38] sm:$0xf]
    %v62 = vld [vmem:[#allocation2 + $0x3c] sm:$0xf]
    %v63 = vld [vmem:[#allocation2 + $0x40] sm:$0xf]
    %v64 = vld [vmem:[#allocation2 + $0x44] sm:$0xf]
    %v65 = vld [vmem:[#allocation2 + $0x48] sm:$0xf]
    %v66 = vld [vmem:[#allocation2 + $0x4c] sm:$0xf]
    %v67 = vld [vmem:[#allocation2 + $0x50] sm:$0xf]
    %v68 = vld [vmem:[#allocation2 + $0x54] sm:$0xf]
    %v69 = vld [vmem:[#allocation2 + $0x58] sm:$0xf]
    %v70 = vld [vmem:[#allocation2 + $0x5c] sm:$0xf]
    %v71 = vld [vmem:[#allocation2 + $0x60] sm:$0xf]
    %v72 = vld [vmem:[#allocation2 + $0x64] sm:$0xf]
    %v73 = vld [vmem:[#allocation2 + $0x68] sm:$0xf]
    %v74 = vld [vmem:[#allocation2 + $0x6c] sm:$0xf]
    %v75 = vld [vmem:[#allocation2 + $0x70] sm:$0xf]
    %v76 = vld [vmem:[#allocation2 + $0x74] sm:$0xf]
    %v77 = vld [vmem:[#allocation2 + $0x78] sm:$0xf]
    %v78 = vld [vmem:[#allocation2 + $0x7c] sm:$0xf]
    %v79 = vld [vmem:[#allocation2 + $0x80] sm:$0xf]
    %v80 = vld [vmem:[#allocation2 + $0x84] sm:$0xf]
    %v81 = vld [vmem:[#allocation2 + $0x88] sm:$0xf]
    %v82 = vld [vmem:[#allocation2 + $0x8c] sm:$0xf]
    %v83 = vld [vmem:[#allocation2 + $0x90] sm:$0xf]
    %v84 = vld [vmem:[#allocation2 + $0x94] sm:$0xf]
    %v85 = vld [vmem:[#allocation2 + $0x98] sm:$0xf]
    %v86 = vld [vmem:[#allocation2 + $0x9c] sm:$0xf]
    %v87 = vld [vmem:[#allocation2 + $0xa0] sm:$0xf]
    %v88 = vld [vmem:[#allocation2 + $0xa4] sm:$0xf]
    %v89 = vld [vmem:[#allocation2 + $0xa8] sm:$0xf]
    %v90 = vld [vmem:[#allocation2 + $0xac] sm:$0xf]
    %v91 = vld [vmem:[#allocation2 + $0xb0] sm:$0xf]
    %v92 = vld [vmem:[#allocation2 + $0xb4] sm:$0xf]
    %v93 = vld [vmem:[#allocation2 + $0xb8] sm:$0xf]
    %v94 = vld [vmem:[#allocation2 + $0xbc] sm:$0xf]
    %v95 = vld [vmem:[#allocation2 + $0xc0] sm:$0xf]
    %v96 = vld [vmem:[#allocation2 + $0xc4] sm:$0xf]
    %v97 = vld [vmem:[#allocation2 + $0xc8] sm:$0xf]
    %v98 = vld [vmem:[#allocation2 + $0xcc] sm:$0xf]
    %v99 = vld [vmem:[#allocation2 + $0xd0] sm:$0xf]
    %v100 = vld [vmem:[#allocation2 + $0xd4] sm:$0xf]
    %v101 = vld [vmem:[#allocation2 + $0xd8] sm:$0xf]
    %v102 = vld [vmem:[#allocation2 + $0xdc] sm:$0xf]
    %v103 = vld [vmem:[#allocation2 + $0xe0] sm:$0xf]
    %v104 = vld [vmem:[#allocation2 + $0xe4] sm:$0xf]
    %v105 = vld [vmem:[#allocation2 + $0xe8] sm:$0xf]
    %v106 = vld [vmem:[#allocation2 + $0xec] sm:$0xf]
    %v107 = vld [vmem:[#allocation2 + $0xf0] sm:$0xf]
    %v108 = vld [vmem:[#allocation2 + $0xf4] sm:$0xf]
    %v109 = vld [vmem:[#allocation2 + $0xf8] sm:$0xf]
    %v110 = vld [vmem:[#allocation2 + $0xfc] sm:$0xf]
    %v111 = vld [vmem:[#allocation5] sm:$0xf]
    %v112 = vld [vmem:[#allocation5 + $0x4] sm:$0xf]
    %v113 = vld [vmem:[#allocation5 + $0x8] sm:$0xf]
    %v114 = vld [vmem:[#allocation5 + $0xc] sm:$0xf]
    %v115 = vld [vmem:[#allocation5 + $0x10] sm:$0xf]
    %v116 = vld [vmem:[#allocation5 + $0x14] sm:$0xf]
    %v117 = vld [vmem:[#allocation5 + $0x18] sm:$0xf]
    %v118 = vld [vmem:[#allocation5 + $0x1c] sm:$0xf]
    %v119 = vld [vmem:[#allocation5 + $0x20] sm:$0xf]
    %v120 = vld [vmem:[#allocation5 + $0x24] sm:$0xf]
    %v121 = vld [vmem:[#allocation5 + $0x28] sm:$0xf]
    %v122 = vld [vmem:[#allocation5 + $0x2c] sm:$0xf]
    %v123 = vld [vmem:[#allocation5 + $0x30] sm:$0xf]
    %v124 = vld [vmem:[#allocation5 + $0x34] sm:$0xf]
    %v125 = vld [vmem:[#allocation5 + $0x38] sm:$0xf]
    %v126 = vld [vmem:[#allocation5 + $0x3c] sm:$0xf]
    %v127 = vld [vmem:[%s2] sm:$0x1]
    %v129 = vperm.slane %v127, 0
    %v195 = vunpack.c.l.b16 %v47
    %v196 = vunpack.c.l.b16 %v48
    %v197 = vunpack.c.l.b16 %v49
    %v198 = vunpack.c.l.b16 %v50
    %v199 = vunpack.c.l.b16 %v51
    %v200 = vunpack.c.l.b16 %v52
    %v201 = vunpack.c.l.b16 %v53
    %v202 = vunpack.c.l.b16 %v54
    %v203 = vunpack.c.l.b16 %v55
    %v204 = vunpack.c.l.b16 %v56
    %v205 = vunpack.c.l.b16 %v57
    %v206 = vunpack.c.l.b16 %v58
    %v207 = vunpack.c.l.b16 %v59
    %v208 = vunpack.c.l.b16 %v60
    %v209 = vunpack.c.l.b16 %v61
    %v210 = vunpack.c.l.b16 %v62
    %v211 = vunpack.c.l.b16 %v63
    %v212 = vunpack.c.l.b16 %v64
    %v213 = vunpack.c.l.b16 %v65
    %v214 = vunpack.c.l.b16 %v66
    %v215 = vunpack.c.l.b16 %v67
    %v216 = vunpack.c.l.b16 %v68
    %v217 = vunpack.c.l.b16 %v69
    %v218 = vunpack.c.l.b16 %v70
    %v219 = vunpack.c.l.b16 %v71
    %v220 = vunpack.c.l.b16 %v72
    %v221 = vunpack.c.l.b16 %v73
    %v222 = vunpack.c.l.b16 %v74
    %v223 = vunpack.c.l.b16 %v75
    %v224 = vunpack.c.l.b16 %v76
    %v225 = vunpack.c.l.b16 %v77
    %v226 = vunpack.c.l.b16 %v78
    %v227 = vunpack.c.l.b16 %v79
    %v228 = vunpack.c.l.b16 %v80
    %v229 = vunpack.c.l.b16 %v81
    %v230 = vunpack.c.l.b16 %v82
    %v231 = vunpack.c.l.b16 %v83
    %v232 = vunpack.c.l.b16 %v84
    %v233 = vunpack.c.l.b16 %v85
    %v234 = vunpack.c.l.b16 %v86
    %v235 = vunpack.c.l.b16 %v87
    %v236 = vunpack.c.l.b16 %v88
    %v237 = vunpack.c.l.b16 %v89
    %v238 = vunpack.c.l.b16 %v90
    %v239 = vunpack.c.l.b16 %v91
    %v240 = vunpack.c.l.b16 %v92
    %v241 = vunpack.c.l.b16 %v93
    %v242 = vunpack.c.l.b16 %v94
    %v243 = vunpack.c.l.b16 %v95
    %v244 = vunpack.c.l.b16 %v96
    %v245 = vunpack.c.l.b16 %v97
    %v246 = vunpack.c.l.b16 %v98
    %v247 = vunpack.c.l.b16 %v99
    %v248 = vunpack.c.l.b16 %v100
    %v249 = vunpack.c.l.b16 %v101
    %v250 = vunpack.c.l.b16 %v102
    %v251 = vunpack.c.l.b16 %v103
    %v252 = vunpack.c.l.b16 %v104
    %v253 = vunpack.c.l.b16 %v105
    %v254 = vunpack.c.l.b16 %v106
    %v255 = vunpack.c.l.b16 %v107
    %v256 = vunpack.c.l.b16 %v108
    %v257 = vunpack.c.l.b16 %v109
    %v258 = vunpack.c.l.b16 %v110
    %v259 = vpack.c.b16 %v196, %v195
    %v260 = vpack.c.b16 %v198, %v197
    %v261 = vpack.c.b16 %v200, %v199
    %v262 = vpack.c.b16 %v202, %v201
    %v263 = vpack.c.b16 %v204, %v203
    %v264 = vpack.c.b16 %v206, %v205
    %v265 = vpack.c.b16 %v208, %v207
    %v266 = vpack.c.b16 %v210, %v209
    %v267 = vpack.c.b16 %v212, %v211
    %v268 = vpack.c.b16 %v214, %v213
    %v269 = vpack.c.b16 %v216, %v215
    %v270 = vpack.c.b16 %v218, %v217
    %v271 = vpack.c.b16 %v220, %v219
    %v272 = vpack.c.b16 %v222, %v221
    %v273 = vpack.c.b16 %v224, %v223
    %v274 = vpack.c.b16 %v226, %v225
    %v275 = vpack.c.b16 %v228, %v227
    %v276 = vpack.c.b16 %v230, %v229
    %v277 = vpack.c.b16 %v232, %v231
    %v278 = vpack.c.b16 %v234, %v233
    %v279 = vpack.c.b16 %v236, %v235
    %v280 = vpack.c.b16 %v238, %v237
    %v281 = vpack.c.b16 %v240, %v239
    %v282 = vpack.c.b16 %v242, %v241
    %v283 = vpack.c.b16 %v244, %v243
    %v284 = vpack.c.b16 %v246, %v245
    %v285 = vpack.c.b16 %v248, %v247
    %v286 = vpack.c.b16 %v250, %v249
    %v287 = vpack.c.b16 %v252, %v251
    %v288 = vpack.c.b16 %v254, %v253
    %v289 = vpack.c.b16 %v256, %v255
    %v290 = vpack.c.b16 %v258, %v257
    %v339 = vunpack.c.l.b16 %v111
    %v340 = vunpack.c.l.b16 %v112
    %v341 = vunpack.c.l.b16 %v113
    %v342 = vunpack.c.l.b16 %v114
    %v343 = vunpack.c.l.b16 %v115
    %v344 = vunpack.c.l.b16 %v116
    %v345 = vunpack.c.l.b16 %v117
    %v346 = vunpack.c.l.b16 %v118
    %v347 = vunpack.c.l.b16 %v119
    %v348 = vunpack.c.l.b16 %v120
    %v349 = vunpack.c.l.b16 %v121
    %v350 = vunpack.c.l.b16 %v122
    %v351 = vunpack.c.l.b16 %v123
    %v352 = vunpack.c.l.b16 %v124
    %v353 = vunpack.c.l.b16 %v125
    %v354 = vunpack.c.l.b16 %v126
    %v355 = vpack.c.b16 %v340, %v339
    %v356 = vpack.c.b16 %v342, %v341
    %v357 = vpack.c.b16 %v344, %v343
    %v358 = vpack.c.b16 %v346, %v345
    %v359 = vpack.c.b16 %v348, %v347
    %v360 = vpack.c.b16 %v350, %v349
    %v361 = vpack.c.b16 %v352, %v351
    %v362 = vpack.c.b16 %v354, %v353
    %371 = vmatpush.bf16.msra.mxu0 %v362
    %372 = vmatpush.bf16.msra.mxu0 %v361
    %373 = vmatpush.bf16.msra.mxu0 %v360
    %374 = vmatpush.bf16.msra.mxu0 %v359
    %375 = vmatpush.bf16.msra.mxu0 %v358
    %376 = vmatpush.bf16.msra.mxu0 %v357
    %377 = vmatpush.bf16.msra.mxu0 %v356
    %378 = vmatpush.bf16.msra.mxu0 %v355
    %379 = vmatmul.bf16.gmra.mxu0 %v259
    %v380 = vpop.f32.mrf.mxu0
    %v381 = vadd.f32 %v129, %v380
    %v382 = vpop.f32.mrf.mxu0
    %v383 = vadd.f32 %v129, %v382
    %384 = vmatmul.bf16.gmra.mxu0 %v260
    %v385 = vpop.f32.mrf.mxu0
    %v386 = vadd.f32 %v129, %v385
    %v387 = vpop.f32.mrf.mxu0
    %v388 = vadd.f32 %v129, %v387
    %389 = vmatmul.bf16.gmra.mxu0 %v261
    %v390 = vpop.f32.mrf.mxu0
    %v391 = vadd.f32 %v129, %v390
    %v392 = vpop.f32.mrf.mxu0
    %v393 = vadd.f32 %v129, %v392
    %394 = vmatmul.bf16.gmra.mxu0 %v262
    %v395 = vpop.f32.mrf.mxu0
    %v396 = vadd.f32 %v129, %v395
    %v397 = vpop.f32.mrf.mxu0
    %v398 = vadd.f32 %v129, %v397
    %399 = vmatmul.bf16.gmra.mxu0 %v263
    %v400 = vpop.f32.mrf.mxu0
    %v401 = vadd.f32 %v129, %v400
    %v402 = vpop.f32.mrf.mxu0
    %v403 = vadd.f32 %v129, %v402
    %404 = vmatmul.bf16.gmra.mxu0 %v264
    %v405 = vpop.f32.mrf.mxu0
    %v406 = vadd.f32 %v129, %v405
    %v407 = vpop.f32.mrf.mxu0
    %v408 = vadd.f32 %v129, %v407
    %409 = vmatmul.bf16.gmra.mxu0 %v265
    %v410 = vpop.f32.mrf.mxu0
    %v411 = vadd.f32 %v129, %v410
    %v412 = vpop.f32.mrf.mxu0
    %v413 = vadd.f32 %v129, %v412
    %414 = vmatmul.bf16.gmra.mxu0 %v266
    %v415 = vpop.f32.mrf.mxu0
    %v416 = vadd.f32 %v129, %v415
    %v417 = vpop.f32.mrf.mxu0
    %v418 = vadd.f32 %v129, %v417
    %419 = vmatmul.bf16.gmra.mxu0 %v267
    %v420 = vpop.f32.mrf.mxu0
    %v421 = vadd.f32 %v129, %v420
    %v422 = vpop.f32.mrf.mxu0
    %v423 = vadd.f32 %v129, %v422
    %424 = vmatmul.bf16.gmra.mxu0 %v268
    %v425 = vpop.f32.mrf.mxu0
    %v426 = vadd.f32 %v129, %v425
    %v427 = vpop.f32.mrf.mxu0
    %v428 = vadd.f32 %v129, %v427
    %429 = vmatmul.bf16.gmra.mxu0 %v269
    %v430 = vpop.f32.mrf.mxu0
    %v431 = vadd.f32 %v129, %v430
    %v432 = vpop.f32.mrf.mxu0
    %v433 = vadd.f32 %v129, %v432
    %434 = vmatmul.bf16.gmra.mxu0 %v270
    %v435 = vpop.f32.mrf.mxu0
    %v436 = vadd.f32 %v129, %v435
    %v437 = vpop.f32.mrf.mxu0
    %v438 = vadd.f32 %v129, %v437
    %439 = vmatmul.bf16.gmra.mxu0 %v271
    %v440 = vpop.f32.mrf.mxu0
    %v441 = vadd.f32 %v129, %v440
    %v442 = vpop.f32.mrf.mxu0
    %v443 = vadd.f32 %v129, %v442
    %444 = vmatmul.bf16.gmra.mxu0 %v272
    %v445 = vpop.f32.mrf.mxu0
    %v446 = vadd.f32 %v129, %v445
    %v447 = vpop.f32.mrf.mxu0
    %v448 = vadd.f32 %v129, %v447
    %449 = vmatmul.bf16.gmra.mxu0 %v273
    %v450 = vpop.f32.mrf.mxu0
    %v451 = vadd.f32 %v129, %v450
    %v452 = vpop.f32.mrf.mxu0
    %v453 = vadd.f32 %v129, %v452
    %454 = vmatmul.bf16.gmra.mxu0 %v274
    %v455 = vpop.f32.mrf.mxu0
    %v456 = vadd.f32 %v129, %v455
    %v457 = vpop.f32.mrf.mxu0
    %v458 = vadd.f32 %v129, %v457
    %459 = vmatmul.bf16.gmra.mxu0 %v275
    %v460 = vpop.f32.mrf.mxu0
    %v461 = vadd.f32 %v129, %v460
    %v462 = vpop.f32.mrf.mxu0
    %v463 = vadd.f32 %v129, %v462
    %464 = vmatmul.bf16.gmra.mxu0 %v276
    %v465 = vpop.f32.mrf.mxu0
    %v466 = vadd.f32 %v129, %v465
    %v467 = vpop.f32.mrf.mxu0
    %v468 = vadd.f32 %v129, %v467
    %469 = vmatmul.bf16.gmra.mxu0 %v277
    %v470 = vpop.f32.mrf.mxu0
    %v471 = vadd.f32 %v129, %v470
    %v472 = vpop.f32.mrf.mxu0
    %v473 = vadd.f32 %v129, %v472
    %474 = vmatmul.bf16.gmra.mxu0 %v278
    %v475 = vpop.f32.mrf.mxu0
    %v476 = vadd.f32 %v129, %v475
    %v477 = vpop.f32.mrf.mxu0
    %v478 = vadd.f32 %v129, %v477
    %479 = vmatmul.bf16.gmra.mxu0 %v279
    %v480 = vpop.f32.mrf.mxu0
    %v481 = vadd.f32 %v129, %v480
    %v482 = vpop.f32.mrf.mxu0
    %v483 = vadd.f32 %v129, %v482
    %484 = vmatmul.bf16.gmra.mxu0 %v280
    %v485 = vpop.f32.mrf.mxu0
    %v486 = vadd.f32 %v129, %v485
    %v487 = vpop.f32.mrf.mxu0
    %v488 = vadd.f32 %v129, %v487
    %489 = vmatmul.bf16.gmra.mxu0 %v281
    %v490 = vpop.f32.mrf.mxu0
    %v491 = vadd.f32 %v129, %v490
    %v492 = vpop.f32.mrf.mxu0
    %v493 = vadd.f32 %v129, %v492
    %494 = vmatmul.bf16.gmra.mxu0 %v282
    %v495 = vpop.f32.mrf.mxu0
    %v496 = vadd.f32 %v129, %v495
    %v497 = vpop.f32.mrf.mxu0
    %v498 = vadd.f32 %v129, %v497
    %499 = vmatmul.bf16.gmra.mxu0 %v283
    %v500 = vpop.f32.mrf.mxu0
    %v501 = vadd.f32 %v129, %v500
    %v502 = vpop.f32.mrf.mxu0
    %v503 = vadd.f32 %v129, %v502
    %504 = vmatmul.bf16.gmra.mxu0 %v284
    %v505 = vpop.f32.mrf.mxu0
    %v506 = vadd.f32 %v129, %v505
    %v507 = vpop.f32.mrf.mxu0
    %v508 = vadd.f32 %v129, %v507
    %509 = vmatmul.bf16.gmra.mxu0 %v285
    %v510 = vpop.f32.mrf.mxu0
    %v511 = vadd.f32 %v129, %v510
    %v512 = vpop.f32.mrf.mxu0
    %v513 = vadd.f32 %v129, %v512
    %514 = vmatmul.bf16.gmra.mxu0 %v286
    %v515 = vpop.f32.mrf.mxu0
    %v516 = vadd.f32 %v129, %v515
    %v517 = vpop.f32.mrf.mxu0
    %v518 = vadd.f32 %v129, %v517
    %519 = vmatmul.bf16.gmra.mxu0 %v287
    %v520 = vpop.f32.mrf.mxu0
    %v521 = vadd.f32 %v129, %v520
    %v522 = vpop.f32.mrf.mxu0
    %v523 = vadd.f32 %v129, %v522
    %524 = vmatmul.bf16.gmra.mxu0 %v288
    %v525 = vpop.f32.mrf.mxu0
    %v526 = vadd.f32 %v129, %v525
    %v527 = vpop.f32.mrf.mxu0
    %v528 = vadd.f32 %v129, %v527
    %529 = vmatmul.bf16.gmra.mxu0 %v289
    %v530 = vpop.f32.mrf.mxu0
    %v531 = vadd.f32 %v129, %v530
    %v532 = vpop.f32.mrf.mxu0
    %v533 = vadd.f32 %v129, %v532
    %534 = vmatmul.bf16.gmra.mxu0 %v290
    %v535 = vpop.f32.mrf.mxu0
    %v536 = vadd.f32 %v129, %v535
    %v537 = vpop.f32.mrf.mxu0
    %v538 = vadd.f32 %v129, %v537
    %539 = vdwg.mxu0
    %540 = vst [vmem:[#allocation7] sm:$0xff] %v381
    %541 = vst [vmem:[#allocation7 + $0x8] sm:$0xff] %v383
    %542 = vst [vmem:[#allocation7 + $0x10] sm:$0xff] %v386
    %543 = vst [vmem:[#allocation7 + $0x18] sm:$0xff] %v388
    %544 = vst [vmem:[#allocation7 + $0x20] sm:$0xff] %v391
    %545 = vst [vmem:[#allocation7 + $0x28] sm:$0xff] %v393
    %546 = vst [vmem:[#allocation7 + $0x30] sm:$0xff] %v396
    %547 = vst [vmem:[#allocation7 + $0x38] sm:$0xff] %v398
    %548 = vst [vmem:[#allocation7 + $0x40] sm:$0xff] %v401
    %549 = vst [vmem:[#allocation7 + $0x48] sm:$0xff] %v403
    %550 = vst [vmem:[#allocation7 + $0x50] sm:$0xff] %v406
    %551 = vst [vmem:[#allocation7 + $0x58] sm:$0xff] %v408
    %552 = vst [vmem:[#allocation7 + $0x60] sm:$0xff] %v411
    %553 = vst [vmem:[#allocation7 + $0x68] sm:$0xff] %v413
    %554 = vst [vmem:[#allocation7 + $0x70] sm:$0xff] %v416
    %555 = vst [vmem:[#allocation7 + $0x78] sm:$0xff] %v418
    %556 = vst [vmem:[#allocation7 + $0x80] sm:$0xff] %v421
    %557 = vst [vmem:[#allocation7 + $0x88] sm:$0xff] %v423
    %558 = vst [vmem:[#allocation7 + $0x90] sm:$0xff] %v426
    %559 = vst [vmem:[#allocation7 + $0x98] sm:$0xff] %v428
    %560 = vst [vmem:[#allocation7 + $0xa0] sm:$0xff] %v431
    %561 = vst [vmem:[#allocation7 + $0xa8] sm:$0xff] %v433
    %562 = vst [vmem:[#allocation7 + $0xb0] sm:$0xff] %v436
    %563 = vst [vmem:[#allocation7 + $0xb8] sm:$0xff] %v438
    %564 = vst [vmem:[#allocation7 + $0xc0] sm:$0xff] %v441
    %565 = vst [vmem:[#allocation7 + $0xc8] sm:$0xff] %v443
    %566 = vst [vmem:[#allocation7 + $0xd0] sm:$0xff] %v446
    %567 = vst [vmem:[#allocation7 + $0xd8] sm:$0xff] %v448
    %568 = vst [vmem:[#allocation7 + $0xe0] sm:$0xff] %v451
    %569 = vst [vmem:[#allocation7 + $0xe8] sm:$0xff] %v453
    %570 = vst [vmem:[#allocation7 + $0xf0] sm:$0xff] %v456
    %571 = vst [vmem:[#allocation7 + $0xf8] sm:$0xff] %v458
    %572 = vst [vmem:[#allocation7 + $0x100] sm:$0xff] %v461
    %573 = vst [vmem:[#allocation7 + $0x108] sm:$0xff] %v463
    %574 = vst [vmem:[#allocation7 + $0x110] sm:$0xff] %v466
    %575 = vst [vmem:[#allocation7 + $0x118] sm:$0xff] %v468
    %576 = vst [vmem:[#allocation7 + $0x120] sm:$0xff] %v471
    %577 = vst [vmem:[#allocation7 + $0x128] sm:$0xff] %v473
    %578 = vst [vmem:[#allocation7 + $0x130] sm:$0xff] %v476
    %579 = vst [vmem:[#allocation7 + $0x138] sm:$0xff] %v478
    %580 = vst [vmem:[#allocation7 + $0x140] sm:$0xff] %v481
    %581 = vst [vmem:[#allocation7 + $0x148] sm:$0xff] %v483
    %582 = vst [vmem:[#allocation7 + $0x150] sm:$0xff] %v486
    %583 = vst [vmem:[#allocation7 + $0x158] sm:$0xff] %v488
    %584 = vst [vmem:[#allocation7 + $0x160] sm:$0xff] %v491
    %585 = vst [vmem:[#allocation7 + $0x168] sm:$0xff] %v493
    %586 = vst [vmem:[#allocation7 + $0x170] sm:$0xff] %v496
    %587 = vst [vmem:[#allocation7 + $0x178] sm:$0xff] %v498
    %588 = vst [vmem:[#allocation7 + $0x180] sm:$0xff] %v501
    %589 = vst [vmem:[#allocation7 + $0x188] sm:$0xff] %v503
    %590 = vst [vmem:[#allocation7 + $0x190] sm:$0xff] %v506
    %591 = vst [vmem:[#allocation7 + $0x198] sm:$0xff] %v508
    %592 = vst [vmem:[#allocation7 + $0x1a0] sm:$0xff] %v511
    %593 = vst [vmem:[#allocation7 + $0x1a8] sm:$0xff] %v513
    %594 = vst [vmem:[#allocation7 + $0x1b0] sm:$0xff] %v516
    %595 = vst [vmem:[#allocation7 + $0x1b8] sm:$0xff] %v518
    %596 = vst [vmem:[#allocation7 + $0x1c0] sm:$0xff] %v521
    %597 = vst [vmem:[#allocation7 + $0x1c8] sm:$0xff] %v523
    %598 = vst [vmem:[#allocation7 + $0x1d0] sm:$0xff] %v526
    %599 = vst [vmem:[#allocation7 + $0x1d8] sm:$0xff] %v528
    %600 = vst [vmem:[#allocation7 + $0x1e0] sm:$0xff] %v531
    %601 = vst [vmem:[#allocation7 + $0x1e8] sm:$0xff] %v533
    %602 = vst [vmem:[#allocation7 + $0x1f0] sm:$0xff] %v536
    %603 = vst [vmem:[#allocation7 + $0x1f8] sm:$0xff] %v538
    // Predicated region
    $region22: #{tpu_custom_call.1} parent=1 // pred_check
      _
    $region23: #{tpu_custom_call.1} parent=1 // pred_check_branch
      %605 = sbr.rel (0) target = $region25
    $region24: #{tpu_custom_call.1} parent=1 // pred_region
      %607 = vsyncadd [#allocation4], 0
      %s608 = sshll.u32 [#allocation7], 4
      %s609 = int_to_ptr.vmem [resolvable:$true] %s608
      %s610 = sshll.u32 %s3, 4
      %s611 = int_to_ptr.hbm [resolvable:$true] %s610
      %616 = dma.vmem_to_hbm [thread:$0]  %s609, 8192, %s611, [#allocation4], 128, 128, 8
    $region25: #{tpu_custom_call.1} parent=1 // pred_fallthru
      _
    // Predicated region
    $region26: #{tpu_custom_call.1} parent=1 // pred_check
      _
    $region27: #{tpu_custom_call.1} parent=1 // pred_check_branch
      %618 = sbr.rel (0) target = $region29
    $region28: #{tpu_custom_call.1} parent=1 // pred_region
      %620 = dma.done [#allocation4], 8192
    $region29: #{tpu_custom_call.1} parent=1 // pred_fallthru
      _
    %621 = vsyncpa [#allocation3], 1
    %622 = vsyncpa [#allocation6], 1
    %623 = vsyncpa [#allocation4], 1

</llo_original>
